<compile_context>
chip_gen: v7x
topology: tpu7x:2x2x1
jax: 0.10.0
libtpu: 0.0.40
codegen_flags: <defaults>
</compile_context>

<pallas_src>
import functools

import jax
import jax.numpy as jnp
from jax.experimental import pallas as pl
from jax.experimental.pallas import tpu as pltpu  # noqa: F401  (TPU backend)

# ----------------------------- configuration -------------------------------
B = 2            # batch
C_IN = 3         # RGB input channels
H = W = 32       # input spatial size (small stand-in for 256)
CF = 32          # encoder feature channels
N_STYLES = 18    # StyleGAN style layers (fixed by direction reshape (1,18,512))
LATENT = 512     # latent dim
HD = WD = 32     # decoder output spatial size (stand-in for 1024)
N_IMG_C = 3      # decoder output image channels
POOL_H = POOL_W = 8   # face_pool target (stand-in for AdaptiveAvgPool2d((256,256)))


# ----------------------------- fused kernel --------------------------------

def _fused_kernel(x_ref, wconv_ref, wenc_ref, coff_ref, fbias_ref,
                  wdec_ref, wfeat_ref, o_ref):
    """Whole forward pass in one invocation; every intermediate stays in VMEM.

    encoder stand-in (GAP + 1x1-conv head) -> codes head (style-mean folded)
    -> latent-avg / direction offset -> fuser bias -> decoder stand-in
    (+ optionally the pre-folded face_pool), written as one (B, 3*HW) slab.
    """
    # --- encoder stand-in: 1x1-conv feature extractor + GAP + linear head ---
    # TODO(synk): Backbone_Mamba_ffhq / Backbone_Mamba_cars internals are
    # external; linear stand-in.  GAP commutes with the 1x1 conv (exact), so
    # pool the input first; the tiny (B,3)x(3,CF) map runs on the VPU.
    x = x_ref[...]                                              # (B, C_IN, H*W) f32
    x_mean = jnp.mean(x, axis=-1)                               # (B, C_IN)
    wc = wconv_ref[...]                                         # (C_IN, CF)
    pooled = jnp.sum(x_mean[:, :, None] * wc[None, :, :], axis=1)   # (B, CF) = GAP(C)

    # codes head: the 18-style mean is folded into wenc offline (exact), so a
    # single (B,CF)x(CF,LATENT) bf16 matmul with f32 accumulation suffices.
    codes_mean = jnp.dot(pooled.astype(jnp.bfloat16), wenc_ref[...],
                         preferred_element_type=jnp.float32)    # (B, LATENT)

    # --- codes = codes + latent_avg.repeat(B,1,1) + alpha*direction ---
    # (style means of latent_avg and the edit direction are pre-folded into
    #  coff; with alpha == 0 the direction contribution is exactly zero)
    cm = codes_mean + coff_ref[...]                             # (B, LATENT)

    # --- F0 = self.fuser(C, direction) ---
    # TODO(synk): Fuser_Model internals unavailable; linear stand-in
    # (per-channel bias from the direction).  The decoder stand-in consumes
    # only mean(F0, spatial) = GAP(C) + bias, so F0 is never materialized.
    fm = pooled + fbias_ref[...]                                # (B, CF)

    # --- decoder stand-in (StyleGAN2 Generator): one linear map to all image
    #     channels; bf16 operands, f32 accumulation on the MXU.  For the
    #     resize=True path the AdaptiveAvgPool matrix is already folded into
    #     wdec/wfeat, so this directly produces the pooled image. ---
    # TODO(synk): Generator internals (styled convs, noise) unavailable.
    dec = (jnp.dot(cm.astype(jnp.bfloat16), wdec_ref[...],
                   preferred_element_type=jnp.float32)
           + jnp.dot(fm.astype(jnp.bfloat16), wfeat_ref[...],
                     preferred_element_type=jnp.float32))       # (B, 3*n_out)
    o_ref[...] = dec


def _full_spec(arr):
    ndim = arr.ndim
    return pl.BlockSpec(arr.shape, lambda *_: (0,) * ndim)


# --------------------------- parameter preparation --------------------------

def prepare_params(params, alpha=0.0):
    """One-time preparation (run once, amortized over every forward call):

      * bf16 copies of all MXU weights (no per-call cast / extra HBM traffic),
      * 18-style mean folded into w_enc:   (CF, 18*512) -> (CF, 512),
      * latent_avg (+ alpha*direction) style means folded into a (1,512) offset,
      * fuser bias folded into a (1,CF) vector (zero when alpha == 0),
      * AdaptiveAvgPool2d folded into pooled decoder weights for resize=True.
    All folds are exact linear identities; only the bf16 cast rounds.
    """
    w_conv = params["w_conv"].astype(jnp.float32)
    w_enc_mean = jnp.mean(params["w_enc"].reshape(CF, N_STYLES, LATENT),
                          axis=1).astype(jnp.bfloat16)           # (CF, LATENT)

    code_offset = jnp.mean(params["latent_avg"], axis=0, keepdims=True)  # (1, LATENT)
    if alpha != 0.0:
        dir_mean = alpha * jnp.mean(params["dir_glasses"][0], axis=0,
                                    keepdims=True)               # (1, LATENT)
        code_offset = code_offset + dir_mean
        feat_bias = dir_mean @ params["w_fuse"]                  # (1, CF)
    else:
        # direction = 0.0 * self.direction['glasses'] -> skip its DMA/compute.
        feat_bias = jnp.zeros((1, CF), jnp.float32)

    w_dec = params["w_dec"]                                      # (LATENT, 3*HD*WD)
    w_feat = params["w_feat"]                                    # (CF,     3*HD*WD)

    # Exact per-channel averaging matrix for AdaptiveAvgPool2d, folded into the
    # decoder weights (resize=True never touches the full-resolution image).
    kh, kw = HD // POOL_H, WD // POOL_W
    ah = jnp.repeat(jnp.eye(POOL_H, dtype=jnp.float32), kh, axis=0) / kh  # (HD, PH)
    aw = jnp.repeat(jnp.eye(POOL_W, dtype=jnp.float32), kw, axis=0) / kw  # (WD, PW)
    pool_c = jnp.kron(ah, aw)                                    # (HD*WD, PH*PW)

    def fold_pool(w, rows):
        w3 = w.reshape(rows, N_IMG_C, HD * WD)
        wp = jnp.einsum("rcn,np->rcp", w3, pool_c)
        return wp.reshape(rows, N_IMG_C * POOL_H * POOL_W)

    return {
        "w_conv": w_conv,
        "w_enc_mean": w_enc_mean,
        "code_offset": code_offset.astype(jnp.float32),
        "feat_bias": feat_bias.astype(jnp.float32),
        "w_dec": w_dec.astype(jnp.bfloat16),
        "w_feat": w_feat.astype(jnp.bfloat16),
        "w_dec_pool": fold_pool(w_dec, LATENT).astype(jnp.bfloat16),
        "w_feat_pool": fold_pool(w_feat, CF).astype(jnp.bfloat16),
    }


# ------------------------------ forward pass -------------------------------

@functools.partial(jax.jit, static_argnames=("resize",))
def mamba_inv_forward(x, prep, resize=True):
    """Mirrors Mamba_Inv.forward(x, resize=..., input_code=False,
    randomize_noise=True, return_latents=False) with one grid-less pallas_call.

    TODO(synk): input_code=True, return_latents=True and randomize_noise
    branches are not implemented (decoder stand-in has no noise inputs).
    """
    Bn, Cin, Hn, Wn = x.shape
    x_flat = x.reshape(Bn, Cin, Hn * Wn)   # channels stay off the lane axis

    if resize:
        w_dec, w_feat = prep["w_dec_pool"], prep["w_feat_pool"]
        n_out = POOL_H * POOL_W
    else:
        w_dec, w_feat = prep["w_dec"], prep["w_feat"]
        n_out = HD * WD

    args = (x_flat, prep["w_conv"], prep["w_enc_mean"],
            prep["code_offset"], prep["feat_bias"], w_dec, w_feat)

    # Whole problem (<4 MiB of weights) fits comfortably in VMEM: no grid,
    # one invocation, full-array blocks, lane-dense (B, 3*n_out) output slab.
    # TODO(synk): at real StyleGAN sizes (1024x1024 output) the decoder N dim
    # must be tiled (<= ~512x4096 bf16 per block on v7x's 64 MiB VMEM) and the
    # pool done as a per-tile reshape-mean instead of a folded matrix.
    out = pl.pallas_call(
        _fused_kernel,
        out_shape=jax.ShapeDtypeStruct((Bn, N_IMG_C * n_out), jnp.float32),
        in_specs=[_full_spec(a) for a in args],
        out_specs=pl.BlockSpec((Bn, N_IMG_C * n_out), lambda *_: (0, 0)),
    )(*args)

    if resize:
        return out.reshape(Bn, N_IMG_C, POOL_H, POOL_W)
    return out.reshape(Bn, N_IMG_C, HD, WD)


# -------------------------- pure-JAX reference -----------------------------

def reference_forward(x, params, resize=True, alpha=0.0):
    Bn, Cin, Hn, Wn = x.shape
    x_cl = jnp.transpose(x, (0, 2, 3, 1)).reshape(Bn * Hn * Wn, Cin)
    feats = x_cl @ params["w_conv"]
    c_feats = jnp.transpose(feats.reshape(Bn, Hn, Wn, CF), (0, 3, 1, 2))
    codes = (jnp.mean(c_feats, axis=(2, 3)) @ params["w_enc"]).reshape(
        Bn, N_STYLES, LATENT)
    direction = alpha * params["dir_glasses"]
    bias = jnp.mean(direction[0], axis=0, keepdims=True) @ params["w_fuse"]
    f0 = c_feats + bias.reshape(1, CF, 1, 1)
    codes = codes + params["latent_avg"][None] + direction
    dec = (jnp.mean(codes, axis=1) @ params["w_dec"]
           + jnp.mean(f0, axis=(2, 3)) @ params["w_feat"])
    out = dec.reshape(Bn, N_IMG_C, HD, WD)
    if resize:
        out = out.reshape(Bn, N_IMG_C, POOL_H, HD // POOL_H,
                          POOL_W, WD // POOL_W).mean(axis=(3, 5))
    return out


# --------------------------------- main -------------------------------------

if __name__ == "__main__":
    key = jax.random.PRNGKey(0)
    keys = jax.random.split(key, 8)

    x = jax.random.normal(keys[0], (B, C_IN, H, W), dtype=jnp.float32)

    params = {
        "w_conv": 0.1 * jax.random.normal(keys[1], (C_IN, CF), jnp.float32),
        "w_enc": 0.05 * jax.random.normal(keys[2], (CF, N_STYLES * LATENT),
                                          jnp.float32),
        "latent_avg": 0.1 * jax.random.normal(keys[3], (N_STYLES, LATENT),
                                              jnp.float32),
        "dir_glasses": jax.random.normal(keys[4], (1, N_STYLES, LATENT),
                                         jnp.float32),
        "w_fuse": 0.05 * jax.random.normal(keys[5], (LATENT, CF), jnp.float32),
        "w_dec": 0.05 * jax.random.normal(keys[6], (LATENT, N_IMG_C * HD * WD),
                                          jnp.float32),
        "w_feat": 0.05 * jax.random.normal(keys[7], (CF, N_IMG_C * HD * WD),
                                           jnp.float32),
    }

    # One-time parameter preparation (bf16 copies + all exact linear folds).
    prep = jax.tree_util.tree_map(jax.block_until_ready,
                                  prepare_params(params, alpha=0.0))

    # resize=True (default path, with face_pool folded into the weights)
    out = jax.block_until_ready(mamba_inv_forward(x, prep, resize=True))
    ref = jax.block_until_ready(reference_forward(x, params, resize=True,
                                                  alpha=0.0))
    assert out.shape == (B, N_IMG_C, POOL_H, POOL_W), out.shape
    assert jnp.allclose(out, ref, rtol=2e-2, atol=2e-3), (
        float(jnp.max(jnp.abs(out - ref))))

    # resize=False (full-resolution decoder output)
    out_full = jax.block_until_ready(mamba_inv_forward(x, prep, resize=False))
    ref_full = jax.block_until_ready(reference_forward(x, params, resize=False,
                                                       alpha=0.0))
    assert out_full.shape == (B, N_IMG_C, HD, WD), out_full.shape
    assert jnp.allclose(out_full, ref_full, rtol=2e-2, atol=2e-3), (
        float(jnp.max(jnp.abs(out_full - ref_full))))

    print("KERNEL_OK")
</pallas_src>

<mosaic_0001>
module attributes {stable_mosaic.version = 11 : i64} {
  func.func @_fused_kernel(%arg0: memref<2x3x1024xf32, #tpu.memory_space<vmem>>, %arg1: memref<3x32xf32, #tpu.memory_space<vmem>>, %arg2: memref<32x512xbf16, #tpu.memory_space<vmem>>, %arg3: memref<1x512xf32, #tpu.memory_space<vmem>>, %arg4: memref<1x32xf32, #tpu.memory_space<vmem>>, %arg5: memref<512x192xbf16, #tpu.memory_space<vmem>>, %arg6: memref<32x192xbf16, #tpu.memory_space<vmem>>, %arg7: memref<2x192xf32, #tpu.memory_space<vmem>>) attributes {dimension_semantics = [], scalar_prefetch = 0 : i64, scratch_operands = 0 : i64, tpu.core_type = #tpu.core_type<tc>} {
    %c0 = arith.constant 0 : index
    %c0_0 = arith.constant 0 : index
    %c0_1 = arith.constant 0 : index
    %0 = vector.load %arg0[%c0, %c0_0, %c0_1] : memref<2x3x1024xf32, #tpu.memory_space<vmem>>, vector<2x3x1024xf32>
    %cst = arith.constant dense<0.000000e+00> : vector<2x3xf32>
    %1 = vector.multi_reduction <add>, %0, %cst [2] : vector<2x3x1024xf32> to vector<2x3xf32>
    %cst_2 = arith.constant 1.024000e+03 : f32
    %2 = vector.broadcast %cst_2 : f32 to vector<2x3xf32>
    %3 = arith.divf %1, %2 : vector<2x3xf32>
    %c0_3 = arith.constant 0 : index
    %c0_4 = arith.constant 0 : index
    %4 = vector.load %arg1[%c0_3, %c0_4] : memref<3x32xf32, #tpu.memory_space<vmem>>, vector<3x32xf32>
    %5 = vector.shape_cast %3 : vector<2x3xf32> to vector<2x3x1xf32>
    %6 = vector.shape_cast %4 : vector<3x32xf32> to vector<1x3x32xf32>
    %7 = vector.broadcast %5 : vector<2x3x1xf32> to vector<2x3x32xf32>
    %8 = vector.broadcast %6 : vector<1x3x32xf32> to vector<2x3x32xf32>
    %9 = arith.mulf %7, %8 : vector<2x3x32xf32>
    %cst_5 = arith.constant dense<0.000000e+00> : vector<2x32xf32>
    %10 = vector.multi_reduction <add>, %9, %cst_5 [1] : vector<2x3x32xf32> to vector<2x32xf32>
    %11 = arith.truncf %10 : vector<2x32xf32> to vector<2x32xbf16>
    %c0_6 = arith.constant 0 : index
    %c0_7 = arith.constant 0 : index
    %12 = vector.load %arg2[%c0_6, %c0_7] : memref<32x512xbf16, #tpu.memory_space<vmem>>, vector<32x512xbf16>
    %cst_8 = arith.constant dense<0.000000e+00> : vector<2x512xf32>
    %13 = tpu.matmul %11, %12, %cst_8 {dimension_numbers = #tpu.dot_dimension_numbers<[1], [0], [0], [1], [0, 0, 1, 1], [], []>} : vector<2x32xbf16>, vector<32x512xbf16>, vector<2x512xf32> -> vector<2x512xf32>
    %c0_9 = arith.constant 0 : index
    %c0_10 = arith.constant 0 : index
    %14 = vector.load %arg3[%c0_9, %c0_10] : memref<1x512xf32, #tpu.memory_space<vmem>>, vector<1x512xf32>
    %15 = vector.broadcast %14 : vector<1x512xf32> to vector<2x512xf32>
    %16 = arith.addf %13, %15 : vector<2x512xf32>
    %c0_11 = arith.constant 0 : index
    %c0_12 = arith.constant 0 : index
    %17 = vector.load %arg4[%c0_11, %c0_12] : memref<1x32xf32, #tpu.memory_space<vmem>>, vector<1x32xf32>
    %18 = vector.broadcast %17 : vector<1x32xf32> to vector<2x32xf32>
    %19 = arith.addf %10, %18 : vector<2x32xf32>
    %20 = arith.truncf %16 : vector<2x512xf32> to vector<2x512xbf16>
    %c0_13 = arith.constant 0 : index
    %c0_14 = arith.constant 0 : index
    %21 = vector.load %arg5[%c0_13, %c0_14] : memref<512x192xbf16, #tpu.memory_space<vmem>>, vector<512x192xbf16>
    %cst_15 = arith.constant dense<0.000000e+00> : vector<2x192xf32>
    %22 = tpu.matmul %20, %21, %cst_15 {dimension_numbers = #tpu.dot_dimension_numbers<[1], [0], [0], [1], [0, 0, 1, 1], [], []>} : vector<2x512xbf16>, vector<512x192xbf16>, vector<2x192xf32> -> vector<2x192xf32>
    %23 = arith.truncf %19 : vector<2x32xf32> to vector<2x32xbf16>
    %c0_16 = arith.constant 0 : index
    %c0_17 = arith.constant 0 : index
    %24 = vector.load %arg6[%c0_16, %c0_17] : memref<32x192xbf16, #tpu.memory_space<vmem>>, vector<32x192xbf16>
    %cst_18 = arith.constant dense<0.000000e+00> : vector<2x192xf32>
    %25 = tpu.matmul %23, %24, %cst_18 {dimension_numbers = #tpu.dot_dimension_numbers<[1], [0], [0], [1], [0, 0, 1, 1], [], []>} : vector<2x32xbf16>, vector<32x192xbf16>, vector<2x192xf32> -> vector<2x192xf32>
    %26 = arith.addf %22, %25 : vector<2x192xf32>
    %c0_19 = arith.constant 0 : index
    %c0_20 = arith.constant 0 : index
    %27 = vector.load %arg7[%c0_19, %c0_20] : memref<2x192xf32, #tpu.memory_space<vmem>>, vector<2x192xf32>
    tpu.vector_store %arg7[%c0_19, %c0_20], %26 {strides = array<i32>} : memref<2x192xf32, #tpu.memory_space<vmem>>, vector<2x192xf32>,
    return
  }
}

</mosaic_0001>

<llo_original>
// kernel: mamba_inv_forward.1
$region0: #{mamba_inv_forward.1}
  #allocation0 [shape = 'u32[]', space=smem, size = 0x4, offset = 0x4, fixed_abs, tag = 'smem constant byte address 0x4 - core index']
  #allocation1 [shape = 'u32[144,128]{1,0:T(1,128)}', space=vmem, size = 0x12000, scoped, tag = 'internal scratch']
  %s0 = inlined_call_operand.vmem [shape: f32[2,3,1024], index: 0, kind: input, shape index: {}]
  %s1 = inlined_call_operand.vmem [shape: f32[3,32], index: 1, kind: input, shape index: {}]
  %s2 = inlined_call_operand.vmem [shape: bf16[32,512], index: 2, kind: input, shape index: {}]
  %s3 = inlined_call_operand.vmem [shape: f32[1,512], index: 3, kind: input, shape index: {}]
  %s4 = inlined_call_operand.vmem [shape: f32[1,32], index: 4, kind: input, shape index: {}]
  %s5 = inlined_call_operand.vmem [shape: bf16[512,192], index: 5, kind: input, shape index: {}]
  %s6 = inlined_call_operand.vmem [shape: bf16[32,192], index: 6, kind: input, shape index: {}]
  %s7 = inlined_call_operand.vmem [shape: f32[2,192], index: 7, kind: output, shape index: {}]
  %s8 = sld [smem:[#allocation0]]
  $region38: #{mamba_inv_forward.1} parent=0
    _
  %s10 = ssub.s32 1, %s8
  %s11 = scalar_select 0, %s10, %s8
  // Predicated region
  $region2: #{mamba_inv_forward.1} parent=0 // pred_check
    _
  $region3: #{mamba_inv_forward.1} parent=0 // pred_check_branch
    %13 = sbr.rel (0) target = $region5
  $region4: #{mamba_inv_forward.1} parent=0 // pred_region
    _
  $region5: #{mamba_inv_forward.1} parent=0 // pred_fallthru
    _
  // Predicated region
  $region6: #{mamba_inv_forward.1} parent=0 // pred_check
    _
  $region7: #{mamba_inv_forward.1} parent=0 // pred_check_branch
    %15 = sbr.rel (0) target = $region9
  $region8: #{mamba_inv_forward.1} parent=0 // pred_region
    _
  $region9: #{mamba_inv_forward.1} parent=0 // pred_fallthru
    _
  // Predicated region
  $region10: #{mamba_inv_forward.1} parent=0 // pred_check
    _
  $region11: #{mamba_inv_forward.1} parent=0 // pred_check_branch
    %17 = sbr.rel (0) target = $region13
  $region12: #{mamba_inv_forward.1} parent=0 // pred_region
    _
  $region13: #{mamba_inv_forward.1} parent=0 // pred_fallthru
    _
  // Predicated region
  $region14: #{mamba_inv_forward.1} parent=0 // pred_check
    _
  $region15: #{mamba_inv_forward.1} parent=0 // pred_check_branch
    %19 = sbr.rel (0) target = $region17
  $region16: #{mamba_inv_forward.1} parent=0 // pred_region
    _
  $region17: #{mamba_inv_forward.1} parent=0 // pred_fallthru
    _
  // Predicated region
  $region18: #{mamba_inv_forward.1} parent=0 // pred_check
    _
  $region19: #{mamba_inv_forward.1} parent=0 // pred_check_branch
    %21 = sbr.rel (0) target = $region21
  $region20: #{mamba_inv_forward.1} parent=0 // pred_region
    _
  $region21: #{mamba_inv_forward.1} parent=0 // pred_fallthru
    _
  // Predicated region
  $region22: #{mamba_inv_forward.1} parent=0 // pred_check
    _
  $region23: #{mamba_inv_forward.1} parent=0 // pred_check_branch
    %23 = sbr.rel (0) target = $region25
  $region24: #{mamba_inv_forward.1} parent=0 // pred_region
    _
  $region25: #{mamba_inv_forward.1} parent=0 // pred_fallthru
    _
  // Predicated region
  $region26: #{mamba_inv_forward.1} parent=0 // pred_check
    _
  $region27: #{mamba_inv_forward.1} parent=0 // pred_check_branch
    %25 = sbr.rel (0) target = $region29
  $region28: #{mamba_inv_forward.1} parent=0 // pred_region
    _
  $region29: #{mamba_inv_forward.1} parent=0 // pred_fallthru
    _
  %v27 = vld [vmem:[%s0] sm:$0x77]
  %v28 = vld [vmem:[%s0 + $0x8] sm:$0x77]
  %v29 = vld [vmem:[%s0 + $0x10] sm:$0x77]
  %v30 = vld [vmem:[%s0 + $0x18] sm:$0x77]
  %v31 = vld [vmem:[%s0 + $0x20] sm:$0x77]
  %v32 = vld [vmem:[%s0 + $0x28] sm:$0x77]
  %v33 = vld [vmem:[%s0 + $0x30] sm:$0x77]
  %v34 = vld [vmem:[%s0 + $0x38] sm:$0x77]
  %v43 = vcombine.high %v27, %v27
  %v44 = vcombine.high %v28, %v28
  %v45 = vcombine.high %v29, %v29
  %v46 = vcombine.high %v30, %v30
  %v47 = vcombine.high %v31, %v31
  %v48 = vcombine.high %v32, %v32
  %v49 = vcombine.high %v33, %v33
  %v50 = vcombine.high %v34, %v34
  %vm59 = vcmask 1042432
  %v60 = vsel %vm59, %v27, 0.0
  %v61 = vsel %vm59, %v43, 0.0
  %v62 = vadd.f32 %v60, %v61
  %v63 = vsel %vm59, %v28, 0.0
  %v64 = vadd.f32 %v62, %v63
  %v65 = vsel %vm59, %v44, 0.0
  %v66 = vadd.f32 %v64, %v65
  %v67 = vsel %vm59, %v29, 0.0
  %v68 = vadd.f32 %v66, %v67
  %v69 = vsel %vm59, %v45, 0.0
  %v70 = vadd.f32 %v68, %v69
  %v71 = vsel %vm59, %v30, 0.0
  %v72 = vadd.f32 %v70, %v71
  %v73 = vsel %vm59, %v46, 0.0
  %v74 = vadd.f32 %v72, %v73
  %75 = vadd.xlane.f32.xlu0 %v74
  %v76 = vpop.xlane.xlu0 %75
  %v77 = vsel %vm59, %v31, 0.0
  %v78 = vsel %vm59, %v47, 0.0
  %v79 = vadd.f32 %v77, %v78
  %v80 = vsel %vm59, %v32, 0.0
  %v81 = vadd.f32 %v79, %v80
  %v82 = vsel %vm59, %v48, 0.0
  %v83 = vadd.f32 %v81, %v82
  %v84 = vsel %vm59, %v33, 0.0
  %v85 = vadd.f32 %v83, %v84
  %v86 = vsel %vm59, %v49, 0.0
  %v87 = vadd.f32 %v85, %v86
  %v88 = vsel %vm59, %v34, 0.0
  %v89 = vadd.f32 %v87, %v88
  %v90 = vsel %vm59, %v50, 0.0
  %v91 = vadd.f32 %v89, %v90
  %92 = vadd.xlane.f32.xlu0 %v91
  %v93 = vpop.xlane.xlu0 %92
  %v94 = vrcp.pop 1024.0
  %v95 = vmul.f32 %v76, %v94
  %v96 = vmul.f32 %v93, %v94
  %v97 = vld [vmem:[%s1] sm:$0x7]
  %v98 = vmul.f32 %v95, %v97
  %v99 = vmul.f32 %v96, %v97
  %vm100 = vcmask 256000
  %v101 = vsel %vm100, %v98, 0.0
  %v102 = vrot.slane %v101, 4
  %v103 = vadd.f32 %v101, %v102
  %v104 = vrot.slane %v103, 2
  %v105 = vadd.f32 %v103, %v104
  %v106 = vrot.slane %v105, 1
  %v107 = vadd.f32 %v105, %v106
  %v108 = vsel %vm100, %v99, 0.0
  %v109 = vrot.slane %v108, 4
  %v110 = vadd.f32 %v108, %v109
  %v111 = vrot.slane %v110, 2
  %v112 = vadd.f32 %v110, %v111
  %v113 = vrot.slane %v112, 1
  %v114 = vadd.f32 %v112, %v113
  %v115 = vpack.c.bf16 %v107, %v107
  %v116 = vpack.c.bf16 %v114, %v114
  %v117 = vld [vmem:[%s2] sm:$0xff]
  %v118 = vld [vmem:[%s2 + $0x8] sm:$0xff]
  %v119 = vld [vmem:[%s2 + $0x10] sm:$0xff]
  %v120 = vld [vmem:[%s2 + $0x18] sm:$0xff]
  %v121 = vld [vmem:[%s2 + $0x20] sm:$0xff]
  %v122 = vld [vmem:[%s2 + $0x28] sm:$0xff]
  %v123 = vld [vmem:[%s2 + $0x30] sm:$0xff]
  %v124 = vld [vmem:[%s2 + $0x38] sm:$0xff]
  %v125 = vld [vmem:[%s3] sm:$0xf]
  %v127 = vlaneseq
  %v128 = vshrl.u32 %v127, 7
  %v129 = vsub.s32 0, %v128
  %v130 = vrot.slane %v125, %v129
  %v131 = vlaneseq
  %v132 = vshrl.u32 %v131, 7
  %v133 = vsub.s32 1, %v132
  %v134 = vrot.slane %v125, %v133
  %v135 = vlaneseq
  %v136 = vshrl.u32 %v135, 7
  %v137 = vsub.s32 2, %v136
  %v138 = vrot.slane %v125, %v137
  %v139 = vlaneseq
  %v140 = vshrl.u32 %v139, 7
  %v141 = vsub.s32 3, %v140
  %v142 = vrot.slane %v125, %v141
  %v149 = vunpack.c.l.b16 %v115
  %v150 = vunpack.c.l.b16 %v116
  %vm151 = vcmask 1041409
  %v152 = vsel %vm151, %v150, %v149
  %v153 = vpack.c.b16 %v152, %v152
  %v162 = vunpack.c.l.b16 %v117
  %v163 = vunpack.c.h.b16 %v117
  %v164 = vunpack.c.l.b16 %v118
  %v165 = vunpack.c.h.b16 %v118
  %v166 = vunpack.c.l.b16 %v119
  %v167 = vunpack.c.h.b16 %v119
  %v168 = vunpack.c.l.b16 %v120
  %v169 = vunpack.c.h.b16 %v120
  %v170 = vunpack.c.l.b16 %v121
  %v171 = vunpack.c.h.b16 %v121
  %v172 = vunpack.c.l.b16 %v122
  %v173 = vunpack.c.h.b16 %v122
  %v174 = vunpack.c.l.b16 %v123
  %v175 = vunpack.c.h.b16 %v123
  %v176 = vunpack.c.l.b16 %v124
  %v177 = vunpack.c.h.b16 %v124
  %v178 = vpack.c.b16 %v166, %v162
  %v179 = vpack.c.b16 %v167, %v163
  %v180 = vpack.c.b16 %v168, %v164
  %v181 = vpack.c.b16 %v169, %v165
  %v182 = vpack.c.b16 %v174, %v170
  %v183 = vpack.c.b16 %v175, %v171
  %v184 = vpack.c.b16 %v176, %v172
  %v185 = vpack.c.b16 %v177, %v173
  %vm194 = vcmask 261120
  %v196 = vsel %vm194, %v153, 0
  %198 = vmatprep.subr.bf16.mxu0 %v179
  %199 = vmatpush1.bf16.msra.mxu0 %v178
  %200 = vmatprep.subr.bf16.mxu0 %v183
  %201 = vmatpush1.bf16.msra.mxu0 %v182
  %202 = vmatprep.subr.bf16.mxu0 0
  %203 = vmatpush1.bf16.msra.mxu0 0
  %204 = vmatprep.subr.bf16.mxu0 0
  %205 = vmatpush1.bf16.msra.mxu0 0
  %206 = vmatprep.subr.bf16.mxu0 0
  %207 = vmatpush1.bf16.msra.mxu0 0
  %208 = vmatprep.subr.bf16.mxu0 0
  %209 = vmatpush1.bf16.msra.mxu0 0
  %210 = vmatprep.subr.bf16.mxu0 0
  %211 = vmatpush1.bf16.msra.mxu0 0
  %212 = vmatprep.subr.bf16.mxu0 0
  %213 = vmatpush1.bf16.msra.mxu0 0
  %214 = vmatprep.subr.bf16.mxu0 0
  %215 = vmatpush1.bf16.msra.mxu0 0
  %216 = vmatprep.subr.bf16.mxu0 0
  %217 = vmatpush1.bf16.msra.mxu0 0
  %218 = vmatprep.subr.bf16.mxu0 0
  %219 = vmatpush1.bf16.msra.mxu0 0
  %220 = vmatprep.subr.bf16.mxu0 0
  %221 = vmatpush1.bf16.msra.mxu0 0
  %222 = vmatprep.subr.bf16.mxu0 0
  %223 = vmatpush1.bf16.msra.mxu0 0
  %224 = vmatprep.subr.bf16.mxu0 0
  %225 = vmatpush1.bf16.msra.mxu0 0
  %226 = vmatprep.subr.bf16.mxu0 0
  %227 = vmatpush1.bf16.msra.mxu0 0
  %228 = vmatprep.subr.bf16.mxu0 0
  %229 = vmatpush1.bf16.msra.mxu0 0
  %230 = vmatprep.mubr.bf16.mxu0 0
  %231 = vmatmul.mubr.bf16.gmra.mrb[0].mxu0 %v196
  %v232 = vpop.f32.mrb[0].mxu0
  %v233 = vadd.f32 %v130, %v232
  %v234 = vpop.f32.mrb[0].mxu0
  %v235 = vadd.f32 %v134, %v234
  %v236 = vpop.f32.mrb[0].mxu0
  %v237 = vpop.f32.mrb[0].mxu0
  %238 = vdwg.mxu0
  %239 = vmatprep.subr.bf16.mxu0 %v181
  %240 = vmatpush1.bf16.msra.mxu0 %v180
  %241 = vmatprep.subr.bf16.mxu0 %v185
  %242 = vmatpush1.bf16.msra.mxu0 %v184
  %243 = vmatprep.subr.bf16.mxu0 0
  %244 = vmatpush1.bf16.msra.mxu0 0
  %245 = vmatprep.subr.bf16.mxu0 0
  %246 = vmatpush1.bf16.msra.mxu0 0
  %247 = vmatprep.subr.bf16.mxu0 0
  %248 = vmatpush1.bf16.msra.mxu0 0
  %249 = vmatprep.subr.bf16.mxu0 0
  %250 = vmatpush1.bf16.msra.mxu0 0
  %251 = vmatprep.subr.bf16.mxu0 0
  %252 = vmatpush1.bf16.msra.mxu0 0
  %253 = vmatprep.subr.bf16.mxu0 0
  %254 = vmatpush1.bf16.msra.mxu0 0
  %255 = vmatprep.subr.bf16.mxu0 0
  %256 = vmatpush1.bf16.msra.mxu0 0
  %257 = vmatprep.subr.bf16.mxu0 0
  %258 = vmatpush1.bf16.msra.mxu0 0
  %259 = vmatprep.subr.bf16.mxu0 0
  %260 = vmatpush1.bf16.msra.mxu0 0
  %261 = vmatprep.subr.bf16.mxu0 0
  %262 = vmatpush1.bf16.msra.mxu0 0
  %263 = vmatprep.subr.bf16.mxu0 0
  %264 = vmatpush1.bf16.msra.mxu0 0
  %265 = vmatprep.subr.bf16.mxu0 0
  %266 = vmatpush1.bf16.msra.mxu0 0
  %267 = vmatprep.subr.bf16.mxu0 0
  %268 = vmatpush1.bf16.msra.mxu0 0
  %269 = vmatprep.subr.bf16.mxu0 0
  %270 = vmatpush1.bf16.msra.mxu0 0
  %271 = vmatprep.mubr.bf16.mxu0 0
  %272 = vmatmul.mubr.bf16.gmra.mrb[0].mxu0 %v196
  %v273 = vpop.f32.mrb[0].mxu0
  %v274 = vadd.f32 %v138, %v273
  %v275 = vpop.f32.mrb[0].mxu0
  %v276 = vadd.f32 %v142, %v275
  %v277 = vpop.f32.mrb[0].mxu0
  %v278 = vpop.f32.mrb[0].mxu0
  %279 = vdwg.mxu0
  %v280 = vld [vmem:[%s4] sm:$0x1]
  %v282 = vlaneseq
  %v283 = vshrl.u32 %v282, 7
  %v284 = vsub.s32 0, %v283
  %v285 = vrot.slane %v280, %v284
  %v287 = vadd.f32 %v107, %v285
  %v288 = vadd.f32 %v114, %v285
  %v289 = vpack.c.bf16 %v233, %v233
  %v290 = vpack.c.bf16 %v235, %v235
  %v291 = vpack.c.bf16 %v274, %v274
  %v292 = vpack.c.bf16 %v276, %v276
  %v293 = vld [vmem:[%s5] sm:$0xff]
  %v294 = vld [vmem:[%s5 + $0x8] sm:$0xff]
  %v295 = vld [vmem:[%s5 + $0x10] sm:$0xff]
  %v296 = vld [vmem:[%s5 + $0x18] sm:$0xff]
  %v297 = vld [vmem:[%s5 + $0x20] sm:$0xff]
  %v298 = vld [vmem:[%s5 + $0x28] sm:$0xff]
  %v299 = vld [vmem:[%s5 + $0x30] sm:$0xff]
  %v300 = vld [vmem:[%s5 + $0x38] sm:$0xff]
  %v301 = vld [vmem:[%s5 + $0x40] sm:$0xff]
  %v302 = vld [vmem:[%s5 + $0x48] sm:$0xff]
  %v303 = vld [vmem:[%s5 + $0x50] sm:$0xff]
  %v304 = vld [vmem:[%s5 + $0x58] sm:$0xff]
  %v305 = vld [vmem:[%s5 + $0x60] sm:$0xff]
  %v306 = vld [vmem:[%s5 + $0x68] sm:$0xff]
  %v307 = vld [vmem:[%s5 + $0x70] sm:$0xff]
  %v308 = vld [vmem:[%s5 + $0x78] sm:$0xff]
  %v309 = vld [vmem:[%s5 + $0x80] sm:$0xff]
  %v310 = vld [vmem:[%s5 + $0x88] sm:$0xff]
  %v311 = vld [vmem:[%s5 + $0x90] sm:$0xff]
  %v312 = vld [vmem:[%s5 + $0x98] sm:$0xff]
  %v313 = vld [vmem:[%s5 + $0xa0] sm:$0xff]
  %v314 = vld [vmem:[%s5 + $0xa8] sm:$0xff]
  %v315 = vld [vmem:[%s5 + $0xb0] sm:$0xff]
  %v316 = vld [vmem:[%s5 + $0xb8] sm:$0xff]
  %v317 = vld [vmem:[%s5 + $0xc0] sm:$0xff]
  %v318 = vld [vmem:[%s5 + $0xc8] sm:$0xff]
  %v319 = vld [vmem:[%s5 + $0xd0] sm:$0xff]
  %v320 = vld [vmem:[%s5 + $0xd8] sm:$0xff]
  %v321 = vld [vmem:[%s5 + $0xe0] sm:$0xff]
  %v322 = vld [vmem:[%s5 + $0xe8] sm:$0xff]
  %v323 = vld [vmem:[%s5 + $0xf0] sm:$0xff]
  %v324 = vld [vmem:[%s5 + $0xf8] sm:$0xff]
  %v325 = vld [vmem:[%s5 + $0x100] sm:$0xff]
  %v326 = vld [vmem:[%s5 + $0x108] sm:$0xff]
  %v327 = vld [vmem:[%s5 + $0x110] sm:$0xff]
  %v328 = vld [vmem:[%s5 + $0x118] sm:$0xff]
  %v329 = vld [vmem:[%s5 + $0x120] sm:$0xff]
  %v330 = vld [vmem:[%s5 + $0x128] sm:$0xff]
  %v331 = vld [vmem:[%s5 + $0x130] sm:$0xff]
  %v332 = vld [vmem:[%s5 + $0x138] sm:$0xff]
  %v333 = vld [vmem:[%s5 + $0x140] sm:$0xff]
  %v334 = vld [vmem:[%s5 + $0x148] sm:$0xff]
  %v335 = vld [vmem:[%s5 + $0x150] sm:$0xff]
  %v336 = vld [vmem:[%s5 + $0x158] sm:$0xff]
  %v337 = vld [vmem:[%s5 + $0x160] sm:$0xff]
  %v338 = vld [vmem:[%s5 + $0x168] sm:$0xff]
  %v339 = vld [vmem:[%s5 + $0x170] sm:$0xff]
  %v340 = vld [vmem:[%s5 + $0x178] sm:$0xff]
  %v341 = vld [vmem:[%s5 + $0x180] sm:$0xff]
  %v342 = vld [vmem:[%s5 + $0x188] sm:$0xff]
  %v343 = vld [vmem:[%s5 + $0x190] sm:$0xff]
  %v344 = vld [vmem:[%s5 + $0x198] sm:$0xff]
  %v345 = vld [vmem:[%s5 + $0x1a0] sm:$0xff]
  %v346 = vld [vmem:[%s5 + $0x1a8] sm:$0xff]
  %v347 = vld [vmem:[%s5 + $0x1b0] sm:$0xff]
  %v348 = vld [vmem:[%s5 + $0x1b8] sm:$0xff]
  %v349 = vld [vmem:[%s5 + $0x1c0] sm:$0xff]
  %v350 = vld [vmem:[%s5 + $0x1c8] sm:$0xff]
  %v351 = vld [vmem:[%s5 + $0x1d0] sm:$0xff]
  %v352 = vld [vmem:[%s5 + $0x1d8] sm:$0xff]
  %v353 = vld [vmem:[%s5 + $0x1e0] sm:$0xff]
  %v354 = vld [vmem:[%s5 + $0x1e8] sm:$0xff]
  %v355 = vld [vmem:[%s5 + $0x1f0] sm:$0xff]
  %v356 = vld [vmem:[%s5 + $0x1f8] sm:$0xff]
  %v357 = vpack.c.bf16 %v287, %v287
  %v358 = vpack.c.bf16 %v288, %v288
  %v359 = vld [vmem:[%s6] sm:$0xff]
  %v360 = vld [vmem:[%s6 + $0x8] sm:$0xff]
  %v361 = vld [vmem:[%s6 + $0x10] sm:$0xff]
  %v362 = vld [vmem:[%s6 + $0x18] sm:$0xff]
  %v365 = vunpack.c.l.b16 %v357
  %v366 = vunpack.c.l.b16 %v358
  %v367 = vrot.slane %v366, 7
  %v368 = vsel %vm151, %v367, %v365
  %v369 = vpack.c.b16 %v368, %v368
  %v374 = vunpack.c.l.b16 %v359
  %v375 = vunpack.c.h.b16 %v359
  %v376 = vunpack.c.l.b16 %v360
  %v377 = vunpack.c.h.b16 %v360
  %v378 = vunpack.c.l.b16 %v361
  %v379 = vunpack.c.h.b16 %v361
  %v380 = vunpack.c.l.b16 %v362
  %v381 = vunpack.c.h.b16 %v362
  %v382 = vpack.c.b16 %v376, %v374
  %v383 = vpack.c.b16 %v377, %v375
  %v384 = vpack.c.b16 %v380, %v378
  %v385 = vpack.c.b16 %v381, %v379
  %v391 = vsel %vm194, %v369, 0
  %393 = vmatprep.subr.bf16.mxu0 %v383
  %394 = vmatpush1.bf16.msra.mxu0 %v382
  %395 = vmatprep.subr.bf16.mxu0 %v385
  %396 = vmatpush1.bf16.msra.mxu0 %v384
  %397 = vmatprep.subr.bf16.mxu0 0
  %398 = vmatpush1.bf16.msra.mxu0 0
  %399 = vmatprep.subr.bf16.mxu0 0
  %400 = vmatpush1.bf16.msra.mxu0 0
  %401 = vmatprep.subr.bf16.mxu0 0
  %402 = vmatpush1.bf16.msra.mxu0 0
  %403 = vmatprep.subr.bf16.mxu0 0
  %404 = vmatpush1.bf16.msra.mxu0 0
  %405 = vmatprep.subr.bf16.mxu0 0
  %406 = vmatpush1.bf16.msra.mxu0 0
  %407 = vmatprep.subr.bf16.mxu0 0
  %408 = vmatpush1.bf16.msra.mxu0 0
  %409 = vmatprep.subr.bf16.mxu0 0
  %410 = vmatpush1.bf16.msra.mxu0 0
  %411 = vmatprep.subr.bf16.mxu0 0
  %412 = vmatpush1.bf16.msra.mxu0 0
  %413 = vmatprep.subr.bf16.mxu0 0
  %414 = vmatpush1.bf16.msra.mxu0 0
  %415 = vmatprep.subr.bf16.mxu0 0
  %416 = vmatpush1.bf16.msra.mxu0 0
  %417 = vmatprep.subr.bf16.mxu0 0
  %418 = vmatpush1.bf16.msra.mxu0 0
  %419 = vmatprep.subr.bf16.mxu0 0
  %420 = vmatpush1.bf16.msra.mxu0 0
  %421 = vmatprep.subr.bf16.mxu0 0
  %422 = vmatpush1.bf16.msra.mxu0 0
  %423 = vmatprep.subr.bf16.mxu0 0
  %424 = vmatpush1.bf16.msra.mxu0 0
  %425 = vmatprep.mubr.bf16.mxu0 0
  %426 = vmatmul.mubr.bf16.gmra.mrb[0].mxu0 %v391
  %v427 = vpop.f32.mrb[0].mxu0
  %v428 = vadd.f32 0.0, %v427
  %v429 = vpop.f32.mrb[0].mxu0
  %v430 = vadd.f32 0.0, %v429
  %v431 = vpop.f32.mrb[0].mxu0
  %v432 = vpop.f32.mrb[0].mxu0
  %433 = vdwg.mxu0
  %v498 = vunpack.c.l.b16 %v293
  %v499 = vunpack.c.h.b16 %v293
  %v500 = vunpack.c.l.b16 %v294
  %v501 = vunpack.c.h.b16 %v294
  %v502 = vunpack.c.l.b16 %v295
  %v503 = vunpack.c.h.b16 %v295
  %v504 = vunpack.c.l.b16 %v296
  %v505 = vunpack.c.h.b16 %v296
  %v506 = vunpack.c.l.b16 %v297
  %v507 = vunpack.c.h.b16 %v297
  %v508 = vunpack.c.l.b16 %v298
  %v509 = vunpack.c.h.b16 %v298
  %v510 = vunpack.c.l.b16 %v299
  %v511 = vunpack.c.h.b16 %v299
  %v512 = vunpack.c.l.b16 %v300
  %v513 = vunpack.c.h.b16 %v300
  %v514 = vunpack.c.l.b16 %v301
  %v515 = vunpack.c.h.b16 %v301
  %v516 = vunpack.c.l.b16 %v302
  %v517 = vunpack.c.h.b16 %v302
  %v518 = vunpack.c.l.b16 %v303
  %v519 = vunpack.c.h.b16 %v303
  %v520 = vunpack.c.l.b16 %v304
  %v521 = vunpack.c.h.b16 %v304
  %v522 = vunpack.c.l.b16 %v305
  %v523 = vunpack.c.h.b16 %v305
  %v524 = vunpack.c.l.b16 %v306
  %v525 = vunpack.c.h.b16 %v306
  %v526 = vunpack.c.l.b16 %v307
  %v527 = vunpack.c.h.b16 %v307
  %v528 = vunpack.c.l.b16 %v308
  %v529 = vunpack.c.h.b16 %v308
  %v530 = vunpack.c.l.b16 %v309
  %v531 = vunpack.c.h.b16 %v309
  %v532 = vunpack.c.l.b16 %v310
  %v533 = vunpack.c.h.b16 %v310
  %v534 = vunpack.c.l.b16 %v311
  %v535 = vunpack.c.h.b16 %v311
  %v536 = vunpack.c.l.b16 %v312
  %v537 = vunpack.c.h.b16 %v312
  %v538 = vunpack.c.l.b16 %v313
  %v539 = vunpack.c.h.b16 %v313
  %v540 = vunpack.c.l.b16 %v314
  %v541 = vunpack.c.h.b16 %v314
  %v542 = vunpack.c.l.b16 %v315
  %v543 = vunpack.c.h.b16 %v315
  %v544 = vunpack.c.l.b16 %v316
  %v545 = vunpack.c.h.b16 %v316
  %v546 = vunpack.c.l.b16 %v317
  %v547 = vunpack.c.h.b16 %v317
  %v548 = vunpack.c.l.b16 %v318
  %v549 = vunpack.c.h.b16 %v318
  %v550 = vunpack.c.l.b16 %v319
  %v551 = vunpack.c.h.b16 %v319
  %v552 = vunpack.c.l.b16 %v320
  %v553 = vunpack.c.h.b16 %v320
  %v554 = vunpack.c.l.b16 %v321
  %v555 = vunpack.c.h.b16 %v321
  %v556 = vunpack.c.l.b16 %v322
  %v557 = vunpack.c.h.b16 %v322
  %v558 = vunpack.c.l.b16 %v323
  %v559 = vunpack.c.h.b16 %v323
  %v560 = vunpack.c.l.b16 %v324
  %v561 = vunpack.c.h.b16 %v324
  %v562 = vunpack.c.l.b16 %v325
  %v563 = vunpack.c.h.b16 %v325
  %v564 = vunpack.c.l.b16 %v326
  %v565 = vunpack.c.h.b16 %v326
  %v566 = vunpack.c.l.b16 %v327
  %v567 = vunpack.c.h.b16 %v327
  %v568 = vunpack.c.l.b16 %v328
  %v569 = vunpack.c.h.b16 %v328
  %v570 = vunpack.c.l.b16 %v329
  %v571 = vunpack.c.h.b16 %v329
  %v572 = vunpack.c.l.b16 %v330
  %v573 = vunpack.c.h.b16 %v330
  %v574 = vunpack.c.l.b16 %v331
  %v575 = vunpack.c.h.b16 %v331
  %v576 = vunpack.c.l.b16 %v332
  %v577 = vunpack.c.h.b16 %v332
  %v578 = vunpack.c.l.b16 %v333
  %v579 = vunpack.c.h.b16 %v333
  %v580 = vunpack.c.l.b16 %v334
  %v581 = vunpack.c.h.b16 %v334
  %v582 = vunpack.c.l.b16 %v335
  %v583 = vunpack.c.h.b16 %v335
  %v584 = vunpack.c.l.b16 %v336
  %v585 = vunpack.c.h.b16 %v336
  %v586 = vunpack.c.l.b16 %v337
  %v587 = vunpack.c.h.b16 %v337
  %v588 = vunpack.c.l.b16 %v338
  %v589 = vunpack.c.h.b16 %v338
  %v590 = vunpack.c.l.b16 %v339
  %v591 = vunpack.c.h.b16 %v339
  %v592 = vunpack.c.l.b16 %v340
  %v593 = vunpack.c.h.b16 %v340
  %v594 = vunpack.c.l.b16 %v341
  %v595 = vunpack.c.h.b16 %v341
  %v596 = vunpack.c.l.b16 %v342
  %v597 = vunpack.c.h.b16 %v342
  %v598 = vunpack.c.l.b16 %v343
  %v599 = vunpack.c.h.b16 %v343
  %v600 = vunpack.c.l.b16 %v344
  %v601 = vunpack.c.h.b16 %v344
  %v602 = vunpack.c.l.b16 %v345
  %v603 = vunpack.c.h.b16 %v345
  %v604 = vunpack.c.l.b16 %v346
  %v605 = vunpack.c.h.b16 %v346
  %v606 = vunpack.c.l.b16 %v347
  %v607 = vunpack.c.h.b16 %v347
  %v608 = vunpack.c.l.b16 %v348
  %v609 = vunpack.c.h.b16 %v348
  %v610 = vunpack.c.l.b16 %v349
  %v611 = vunpack.c.h.b16 %v349
  %v612 = vunpack.c.l.b16 %v350
  %v613 = vunpack.c.h.b16 %v350
  %v614 = vunpack.c.l.b16 %v351
  %v615 = vunpack.c.h.b16 %v351
  %v616 = vunpack.c.l.b16 %v352
  %v617 = vunpack.c.h.b16 %v352
  %v618 = vunpack.c.l.b16 %v353
  %v619 = vunpack.c.h.b16 %v353
  %v620 = vunpack.c.l.b16 %v354
  %v621 = vunpack.c.h.b16 %v354
  %v622 = vunpack.c.l.b16 %v355
  %v623 = vunpack.c.h.b16 %v355
  %v624 = vunpack.c.l.b16 %v356
  %v625 = vunpack.c.h.b16 %v356
  %v626 = vpack.c.b16 %v500, %v498
  %v627 = vpack.c.b16 %v501, %v499
  %v628 = vpack.c.b16 %v504, %v502
  %v629 = vpack.c.b16 %v505, %v503
  %v630 = vpack.c.b16 %v508, %v506
  %v631 = vpack.c.b16 %v509, %v507
  %v632 = vpack.c.b16 %v512, %v510
  %v633 = vpack.c.b16 %v513, %v511
  %v634 = vpack.c.b16 %v516, %v514
  %v635 = vpack.c.b16 %v517, %v515
  %v636 = vpack.c.b16 %v520, %v518
  %v637 = vpack.c.b16 %v521, %v519
  %v638 = vpack.c.b16 %v524, %v522
  %v639 = vpack.c.b16 %v525, %v523
  %v640 = vpack.c.b16 %v528, %v526
  %v641 = vpack.c.b16 %v529, %v527
  %v642 = vpack.c.b16 %v532, %v530
  %v643 = vpack.c.b16 %v533, %v531
  %v644 = vpack.c.b16 %v536, %v534
  %v645 = vpack.c.b16 %v537, %v535
  %v646 = vpack.c.b16 %v540, %v538
  %v647 = vpack.c.b16 %v541, %v539
  %v648 = vpack.c.b16 %v544, %v542
  %v649 = vpack.c.b16 %v545, %v543
  %v650 = vpack.c.b16 %v548, %v546
  %v651 = vpack.c.b16 %v549, %v547
  %v652 = vpack.c.b16 %v552, %v550
  %v653 = vpack.c.b16 %v553, %v551
  %v654 = vpack.c.b16 %v556, %v554
  %v655 = vpack.c.b16 %v557, %v555
  %v656 = vpack.c.b16 %v560, %v558
  %v657 = vpack.c.b16 %v561, %v559
  %v658 = vpack.c.b16 %v564, %v562
  %v659 = vpack.c.b16 %v565, %v563
  %v660 = vpack.c.b16 %v568, %v566
  %v661 = vpack.c.b16 %v569, %v567
  %v662 = vpack.c.b16 %v572, %v570
  %v663 = vpack.c.b16 %v573, %v571
  %v664 = vpack.c.b16 %v576, %v574
  %v665 = vpack.c.b16 %v577, %v575
  %v666 = vpack.c.b16 %v580, %v578
  %v667 = vpack.c.b16 %v581, %v579
  %v668 = vpack.c.b16 %v584, %v582
  %v669 = vpack.c.b16 %v585, %v583
  %v670 = vpack.c.b16 %v588, %v586
  %v671 = vpack.c.b16 %v589, %v587
  %v672 = vpack.c.b16 %v592, %v590
  %v673 = vpack.c.b16 %v593, %v591
  %v674 = vpack.c.b16 %v596, %v594
  %v675 = vpack.c.b16 %v597, %v595
  %v676 = vpack.c.b16 %v600, %v598
  %v677 = vpack.c.b16 %v601, %v599
  %v678 = vpack.c.b16 %v604, %v602
  %v679 = vpack.c.b16 %v605, %v603
  %v680 = vpack.c.b16 %v608, %v606
  %v681 = vpack.c.b16 %v609, %v607
  %v682 = vpack.c.b16 %v612, %v610
  %v683 = vpack.c.b16 %v613, %v611
  %v684 = vpack.c.b16 %v616, %v614
  %v685 = vpack.c.b16 %v617, %v615
  %v686 = vpack.c.b16 %v620, %v618
  %v687 = vpack.c.b16 %v621, %v619
  %v688 = vpack.c.b16 %v624, %v622
  %v689 = vpack.c.b16 %v625, %v623
  %754 = vmatprep.subr.bf16.mxu0 %v627
  %755 = vmatpush1.bf16.msra.mxu0 %v626
  %756 = vmatprep.subr.bf16.mxu0 %v629
  %757 = vmatpush1.bf16.msra.mxu0 %v628
  %758 = vmatprep.subr.bf16.mxu0 %v631
  %759 = vmatpush1.bf16.msra.mxu0 %v630
  %760 = vmatprep.subr.bf16.mxu0 %v633
  %761 = vmatpush1.bf16.msra.mxu0 %v632
  %762 = vmatprep.subr.bf16.mxu0 %v635
  %763 = vmatpush1.bf16.msra.mxu0 %v634
  %764 = vmatprep.subr.bf16.mxu0 %v637
  %765 = vmatpush1.bf16.msra.mxu0 %v636
  %766 = vmatprep.subr.bf16.mxu0 %v639
  %767 = vmatpush1.bf16.msra.mxu0 %v638
  %768 = vmatprep.subr.bf16.mxu0 %v641
  %769 = vmatpush1.bf16.msra.mxu0 %v640
  %770 = vmatprep.subr.bf16.mxu0 %v643
  %771 = vmatpush1.bf16.msra.mxu0 %v642
  %772 = vmatprep.subr.bf16.mxu0 %v645
  %773 = vmatpush1.bf16.msra.mxu0 %v644
  %774 = vmatprep.subr.bf16.mxu0 %v647
  %775 = vmatpush1.bf16.msra.mxu0 %v646
  %776 = vmatprep.subr.bf16.mxu0 %v649
  %777 = vmatpush1.bf16.msra.mxu0 %v648
  %778 = vmatprep.subr.bf16.mxu0 %v651
  %779 = vmatpush1.bf16.msra.mxu0 %v650
  %780 = vmatprep.subr.bf16.mxu0 %v653
  %781 = vmatpush1.bf16.msra.mxu0 %v652
  %782 = vmatprep.subr.bf16.mxu0 %v655
  %783 = vmatpush1.bf16.msra.mxu0 %v654
  %784 = vmatprep.subr.bf16.mxu0 %v657
  %785 = vmatpush1.bf16.msra.mxu0 %v656
  %786 = vmatprep.mubr.bf16.mxu0 %v290
  %787 = vmatmul.mubr.bf16.gmra.mrb[0].mxu0 %v289
  %v788 = vpop.f32.mrb[0].mxu0
  %v789 = vadd.f32 %v428, %v788
  %v790 = vpop.f32.mrb[0].mxu0
  %v791 = vadd.f32 %v430, %v790
  %v792 = vpop.f32.mrb[0].mxu0
  %v793 = vpop.f32.mrb[0].mxu0
  %794 = vdwg.mxu0
  %795 = vmatprep.subr.bf16.mxu0 %v659
  %796 = vmatpush1.bf16.msra.mxu0 %v658
  %797 = vmatprep.subr.bf16.mxu0 %v661
  %798 = vmatpush1.bf16.msra.mxu0 %v660
  %799 = vmatprep.subr.bf16.mxu0 %v663
  %800 = vmatpush1.bf16.msra.mxu0 %v662
  %801 = vmatprep.subr.bf16.mxu0 %v665
  %802 = vmatpush1.bf16.msra.mxu0 %v664
  %803 = vmatprep.subr.bf16.mxu0 %v667
  %804 = vmatpush1.bf16.msra.mxu0 %v666
  %805 = vmatprep.subr.bf16.mxu0 %v669
  %806 = vmatpush1.bf16.msra.mxu0 %v668
  %807 = vmatprep.subr.bf16.mxu0 %v671
  %808 = vmatpush1.bf16.msra.mxu0 %v670
  %809 = vmatprep.subr.bf16.mxu0 %v673
  %810 = vmatpush1.bf16.msra.mxu0 %v672
  %811 = vmatprep.subr.bf16.mxu0 %v675
  %812 = vmatpush1.bf16.msra.mxu0 %v674
  %813 = vmatprep.subr.bf16.mxu0 %v677
  %814 = vmatpush1.bf16.msra.mxu0 %v676
  %815 = vmatprep.subr.bf16.mxu0 %v679
  %816 = vmatpush1.bf16.msra.mxu0 %v678
  %817 = vmatprep.subr.bf16.mxu0 %v681
  %818 = vmatpush1.bf16.msra.mxu0 %v680
  %819 = vmatprep.subr.bf16.mxu0 %v683
  %820 = vmatpush1.bf16.msra.mxu0 %v682
  %821 = vmatprep.subr.bf16.mxu0 %v685
  %822 = vmatpush1.bf16.msra.mxu0 %v684
  %823 = vmatprep.subr.bf16.mxu0 %v687
  %824 = vmatpush1.bf16.msra.mxu0 %v686
  %825 = vmatprep.subr.bf16.mxu0 %v689
  %826 = vmatpush1.bf16.msra.mxu0 %v688
  %827 = vmatprep.mubr.bf16.mxu0 %v292
  %828 = vmatmul.mubr.bf16.gmra.mrb[0].mxu0 %v291
  %v829 = vpop.f32.mrb[0].mxu0
  %v830 = vadd.f32 %v789, %v829
  %v831 = vpop.f32.mrb[0].mxu0
  %v832 = vadd.f32 %v791, %v831
  %v833 = vpop.f32.mrb[0].mxu0
  %v834 = vpop.f32.mrb[0].mxu0
  %835 = vdwg.mxu0
  %v838 = vcombine.low %v830, %v832
  %v840 = vunpack.c.l.s4 1983009808
  %v841 = vunpack.c.0.s8 %v840
  %v842 = vlaneseq
  %v843 = vshrl.u32 %v842, 7
  %v844 = vsub.s32 %v841, %v843
  %v845 = vrot.slane %v838, %v844
  %vm847 = vcmask 1041408
  %vm848 = vcmask 519170
  %vm849 = vmor %vm848, %vm847
  %850 = vst.msk [vmem:[%s7] sm:$0xf] %vm849, %v845
  // Predicated region
  $region30: #{mamba_inv_forward.1} parent=0 // pred_check
    _
  $region31: #{mamba_inv_forward.1} parent=0 // pred_check_branch
    %852 = sbr.rel (0) target = $region33
  $region32: #{mamba_inv_forward.1} parent=0 // pred_region
    _
  $region33: #{mamba_inv_forward.1} parent=0 // pred_fallthru
    _
  // Predicated region
  $region34: #{mamba_inv_forward.1} parent=0 // pred_check
    _
  $region35: #{mamba_inv_forward.1} parent=0 // pred_check_branch
    %854 = sbr.rel (0) target = $region37
  $region36: #{mamba_inv_forward.1} parent=0 // pred_region
    _
  $region37: #{mamba_inv_forward.1} parent=0 // pred_fallthru
    _

</llo_original>
